<compile_context>
chip_gen: v7x
topology: tpu7x:2x2x1
jax: 0.10.0
libtpu: 0.0.40
codegen_flags: <defaults>
</compile_context>

<pallas_src>
import jax
import jax.numpy as jnp
from jax.experimental import pallas as pl
from jax.experimental.pallas import tpu as pltpu


def _log1p_timediff_kernel(t_i_ref, t_rep_ref, inv_ref, out_ref):
    # t_i_ref:   (1, TILE_I, 1)       int32   timestamps of current i-tile (sublanes)
    # t_rep_ref: (1, 1, TILE_JH)      int32   timestamps repeated H x (lanes, flat (j,d))
    # inv_ref:   (1, TILE_JH)         f32     inv_freq tiled L x, 1/time_unit folded in
    # out_ref:   (1, TILE_I, TILE_JH) f32/bf16 lane-dense output slab
    t_i = t_i_ref[0]                                  # (TILE_I, 1) int32
    t_j = t_rep_ref[0]                                # (1, TILE_JH) int32
    diff = jnp.abs(t_i - t_j).astype(jnp.float32)     # exact int32 subtraction
    # One VPU mul + EUP log1p per element, optional downcast, unmasked lane-dense store.
    # TODO(synk): if a v7x bundle dump shows the single EUP binding (bf16 output at
    # 3.2 TB/s), evaluate log1p in bf16 there (~2x EUP throughput on v6e/v7x).
    out_ref[0] = jnp.log1p(diff * inv_ref[...]).astype(out_ref.dtype)


def _choose_tiles(B, L, H, out_elem_bytes, *, min_steps=4):
    """Pick (tile_i, tile_jh, vmem_limit_bytes) for the (B, L, L*H) output.

    tile_i : divisor of L that is a multiple of 8 (or == L).
    tile_jh: multiple of 128 dividing L*H (or == L*H if that's impossible).
    The double-buffered output tile is kept within ~30% of this chip's VMEM,
    and we try to keep >= min_steps grid steps so megacore (v7x) has work.
    """
    LH = L * H
    try:
        vmem = int(pltpu.get_tpu_info().vmem_capacity_bytes)
    except Exception:
        vmem = 64 << 20  # conservative (v7x per-TC) fallback
    tile_budget = max(1 << 20, (vmem * 3) // 20)  # ~15% per buffer -> ~30% double-buffered

    lane_tiles = [d for d in range(LH, 127, -128) if d % 128 == 0 and LH % d == 0]
    if not lane_tiles:
        lane_tiles = [LH]  # small/odd L*H: full row (may end in masked stores)
    sub_tiles = [d for d in range(L, 0, -1) if L % d == 0 and (d % 8 == 0 or d == L)]

    candidates = []
    for ti in sub_tiles:
        for tjh in lane_tiles:
            tile_bytes = ti * tjh * out_elem_bytes
            steps = B * (L // ti) * (LH // tjh)
            candidates.append((tile_bytes <= tile_budget, steps >= min_steps,
                               tile_bytes, ti, tjh))

    fits = [c for c in candidates if c[0]]
    if fits:
        enough = [c for c in fits if c[1]]
        pool = enough or fits
        # Largest tile amortizes the ~0.35 us/step overhead; tie-break on wider lanes.
        _, _, tile_bytes, ti, tjh = max(pool, key=lambda c: (c[2], c[4]))
    else:
        _, _, tile_bytes, ti, tjh = min(candidates, key=lambda c: c[2])

    # Working set: double-buffered output tile + double-buffered (tiny) input tiles.
    work = 2 * tile_bytes + 4 * (tjh * 4) + (2 << 20)
    vmem_limit = min(max(32 << 20, 2 * work), int(vmem * 3 // 4))
    vmem_limit = max(vmem_limit, work + (4 << 20))
    return ti, tjh, int(vmem_limit)


def log1p_time_diff_embedding(timestamps, *, hidden, freq, time_unit_divide,
                              out_dtype=jnp.float32):
    """timestamps: (B, L) int. Returns (B, L, L, hidden) in out_dtype (default f32)."""
    B, L = timestamps.shape
    H = hidden
    LH = L * H
    out_elem_bytes = jnp.dtype(out_dtype).itemsize
    tile_i, tile_jh, vmem_limit = _choose_tiles(B, L, H, out_elem_bytes)

    # Parameter / glue setup in plain JAX (tiny relative to the (B,L,L,H) output).
    freq_seq = jnp.arange(0, H, dtype=jnp.float32)
    inv_freq = 1.0 / jnp.power(jnp.float32(freq), freq_seq / H)
    # Fold 1/time_unit_divide into the frequencies and tile lane-densely to (1, L*H).
    inv_tiled = jnp.tile(inv_freq / jnp.float32(time_unit_divide), L).reshape(1, LH)

    t = timestamps.astype(jnp.int32)
    t_i_in = t.reshape(B, L, 1)                               # i along sublanes
    t_rep_in = jnp.repeat(t, H, axis=1).reshape(B, 1, LH)     # (j, d) flattened along lanes

    # Bandwidth-dominated custom call: tell XLA's scheduler.
    n_out = B * L * LH
    cost = pl.CostEstimate(
        flops=3 * n_out,
        transcendentals=n_out,
        bytes_accessed=out_elem_bytes * n_out + 4 * B * LH + 4 * B * L + 4 * LH,
    )

    out = pl.pallas_call(
        _log1p_timediff_kernel,
        out_shape=jax.ShapeDtypeStruct((B, L, LH), out_dtype),
        grid_spec=pltpu.PrefetchScalarGridSpec(
            num_scalar_prefetch=0,
            grid=(B, L // tile_i, LH // tile_jh),
            in_specs=[
                pl.BlockSpec((1, tile_i, 1), lambda b, i, jh: (b, i, 0)),
                pl.BlockSpec((1, 1, tile_jh), lambda b, i, jh: (b, 0, jh)),
                pl.BlockSpec((1, tile_jh), lambda b, i, jh: (0, jh)),
            ],
            out_specs=pl.BlockSpec((1, tile_i, tile_jh), lambda b, i, jh: (b, i, jh)),
        ),
        compiler_params=pltpu.CompilerParams(
            dimension_semantics=("parallel", "parallel", "parallel"),
            vmem_limit_bytes=vmem_limit,
        ),
        cost_estimate=cost,
    )(t_i_in, t_rep_in, inv_tiled)

    # Free reshape back to the PyTorch output layout.
    return out.reshape(B, L, L, H)


def _reference(timestamps, *, hidden, freq, time_unit_divide):
    t = timestamps
    diff = jnp.abs(t[:, :, None] - t[:, None, :]).astype(jnp.float32) / time_unit_divide
    freq_seq = jnp.arange(0, hidden, dtype=jnp.float32)
    inv_freq = 1.0 / jnp.power(jnp.float32(freq), freq_seq / hidden)
    return jnp.log1p(jnp.einsum("bij,d->bijd", diff, inv_freq))


if __name__ == "__main__":
    # Synthetic "args": hidden_units=32, freq=10000, time_unit_divide=60
    HIDDEN = 32
    FREQ = 10000.0
    TIME_UNIT_DIVIDE = 60.0

    B, L = 2, 8
    key = jax.random.PRNGKey(0)
    timestamps = jax.random.randint(key, (B, L), 0, 1_000_000, dtype=jnp.int32)

    out = log1p_time_diff_embedding(
        timestamps, hidden=HIDDEN, freq=FREQ, time_unit_divide=TIME_UNIT_DIVIDE
    )
    out = jax.block_until_ready(out)

    ref = _reference(
        timestamps, hidden=HIDDEN, freq=FREQ, time_unit_divide=TIME_UNIT_DIVIDE
    )
    assert out.shape == (B, L, L, HIDDEN)
    assert out.dtype == jnp.float32
    assert jnp.allclose(out, ref, rtol=1e-5, atol=1e-5), "mismatch vs reference"

    # Exercise the bf16-output fast path (2x less HBM write traffic) as a smoke test.
    out_bf16 = log1p_time_diff_embedding(
        timestamps, hidden=HIDDEN, freq=FREQ, time_unit_divide=TIME_UNIT_DIVIDE,
        out_dtype=jnp.bfloat16,
    )
    out_bf16 = jax.block_until_ready(out_bf16)
    assert out_bf16.dtype == jnp.bfloat16
    assert jnp.allclose(out_bf16.astype(jnp.float32), ref, rtol=2e-2, atol=2e-2)

    print("KERNEL_OK")
</pallas_src>

<mosaic_0001>
module attributes {stable_mosaic.version = 11 : i64} {
  func.func @_log1p_timediff_kernel(%arg0: i32, %arg1: i32, %arg2: i32, %arg3: memref<1x8x1xi32, #tpu.memory_space<vmem>>, %arg4: memref<1x1x128xi32, #tpu.memory_space<vmem>>, %arg5: memref<1x128xf32, #tpu.memory_space<vmem>>, %arg6: memref<1x8x128xf32, #tpu.memory_space<vmem>>) attributes {dimension_semantics = [#tpu.dimension_semantics<parallel>, #tpu.dimension_semantics<parallel>, #tpu.dimension_semantics<parallel>], iteration_bounds = array<i64: 2, 1, 2>, scalar_prefetch = 0 : i64, scratch_operands = 0 : i64, tpu.core_type = #tpu.core_type<tc>, window_params = [{transform_indices = @transform_0, window_bounds = array<i64: 1, 8, 1>}, {transform_indices = @transform_1, window_bounds = array<i64: 1, 1, 128>}, {transform_indices = @transform_2, window_bounds = array<i64: 1, 128>}, {transform_indices = @transform_3, window_bounds = array<i64: 1, 8, 128>}]} {
    %c0 = arith.constant 0 : index
    %c0_0 = arith.constant 0 : index
    %c0_1 = arith.constant 0 : index
    %0 = vector.load %arg3[%c0, %c0_0, %c0_1] : memref<1x8x1xi32, #tpu.memory_space<vmem>>, vector<1x8x1xi32>
    %1 = vector.shape_cast %0 : vector<1x8x1xi32> to vector<8x1xi32>
    %c0_2 = arith.constant 0 : index
    %c0_3 = arith.constant 0 : index
    %c0_4 = arith.constant 0 : index
    %2 = vector.load %arg4[%c0_2, %c0_3, %c0_4] : memref<1x1x128xi32, #tpu.memory_space<vmem>>, vector<1x1x128xi32>
    %3 = vector.shape_cast %2 : vector<1x1x128xi32> to vector<1x128xi32>
    %4 = vector.broadcast %1 : vector<8x1xi32> to vector<8x128xi32>
    %5 = vector.broadcast %3 : vector<1x128xi32> to vector<8x128xi32>
    %6 = arith.subi %4, %5 : vector<8x128xi32>
    %7 = math.absi %6 : vector<8x128xi32>
    %8 = arith.sitofp %7 : vector<8x128xi32> to vector<8x128xf32>
    %c0_5 = arith.constant 0 : index
    %c0_6 = arith.constant 0 : index
    %9 = vector.load %arg5[%c0_5, %c0_6] : memref<1x128xf32, #tpu.memory_space<vmem>>, vector<1x128xf32>
    %10 = vector.broadcast %9 : vector<1x128xf32> to vector<8x128xf32>
    %11 = arith.mulf %8, %10 : vector<8x128xf32>
    %12 = math.log1p %11 : vector<8x128xf32>
    %c0_7 = arith.constant 0 : index
    %c0_8 = arith.constant 0 : index
    %c0_9 = arith.constant 0 : index
    %13 = vector.load %arg6[%c0_7, %c0_8, %c0_9] : memref<1x8x128xf32, #tpu.memory_space<vmem>>, vector<1x8x128xf32>
    %14 = vector.shape_cast %13 : vector<1x8x128xf32> to vector<8x128xf32>
    %15 = vector.shape_cast %12 : vector<8x128xf32> to vector<1x8x128xf32>
    tpu.vector_store %arg6[%c0_7, %c0_8, %c0_9], %15 {strides = array<i32>} : memref<1x8x128xf32, #tpu.memory_space<vmem>>, vector<1x8x128xf32>,
    return
  }
  func.func @transform_0(%arg0: i32, %arg1: i32, %arg2: i32) -> (i32, i32, i32) {
    %c0_i32 = arith.constant 0 : i32
    %c0_i32_0 = arith.constant 0 : i32
    return %arg0, %arg1, %c0_i32 : i32, i32, i32
  }
  func.func @transform_1(%arg0: i32, %arg1: i32, %arg2: i32) -> (i32, i32, i32) {
    %c0_i32 = arith.constant 0 : i32
    %c0_i32_0 = arith.constant 0 : i32
    return %arg0, %c0_i32, %arg2 : i32, i32, i32
  }
  func.func @transform_2(%arg0: i32, %arg1: i32, %arg2: i32) -> (i32, i32) {
    %c0_i32 = arith.constant 0 : i32
    %c0_i32_0 = arith.constant 0 : i32
    return %c0_i32, %arg2 : i32, i32
  }
  func.func @transform_3(%arg0: i32, %arg1: i32, %arg2: i32) -> (i32, i32, i32) {
    %c0_i32 = arith.constant 0 : i32
    return %arg0, %arg1, %arg2 : i32, i32, i32
  }
}

</mosaic_0001>

<llo_original>
// kernel: tpu_custom_call.1
$region0: #{tpu_custom_call.1}
  #allocation0 [shape = 'u32[]', space=smem, size = 0x4, offset = 0x4, fixed_abs, tag = 'smem constant byte address 0x4 - core index']
  #allocation1 [shape = 'u32[144,128]{1,0:T(1,128)}', space=vmem, size = 0x12000, scoped, tag = 'internal scratch']
  %s0 = inlined_call_operand.vmem [shape: s32[2,8,1], index: 0, kind: input, shape index: {}]
  %s1 = inlined_call_operand.vmem [shape: s32[2,1,256], index: 1, kind: input, shape index: {}]
  %s2 = inlined_call_operand.vmem [shape: f32[1,256], index: 2, kind: input, shape index: {}]
  %s3 = inlined_call_operand.hbm [shape: f32[2,8,256], index: 3, kind: output, shape index: {}]
  %s4 = sld [smem:[#allocation0]]
  $region45: #{tpu_custom_call.1} parent=0
    _
  %s6 = ssub.s32 1, %s4
  %s7 = scalar_select 0, %s6, %s4
  $region1: #{tpu_custom_call.1} parent=0
    #allocation2 [shape = 'u8[8192]{0}', space=vmem, size = 0x2000, scoped, tag = 'output window, operand 0']
    #allocation3 [shape = 's32[2]{0}', space=sflag, size = 0x8, scoped, tag = 'scoped memory for tpu_custom_call.1']
    %8 = vsyncpa [#allocation3], 0
    %s9 = scalar_lea.sflag [#allocation3], 1
    %10 = vsyncpa %s9, 0
    loop: start=0, step=1, limit=6
    $region2: #{tpu_custom_call.1} parent=1 // loop_pre_header
      _
    $region3: #{tpu_custom_call.1} parent=1 // loop_header
      %s12 = sphi 0, %s16
      %p13 = scmp.ge.s32.totalorder %s12, 6
      %s19 = sphi 0, %s38
      %s20 = sphi 0, %s34
      %s21 = sphi 0, %s30
      %s22 = sphi 0, %s19
      %s23 = sphi 0, %s20
      %s24 = sphi 0, %s21
      %s25 = sphi 0, %s22
      %s26 = sphi 0, %s23
      %s27 = sphi 0, %s24
      %s43 = sphi 0, %s45
      %s46 = sphi 0, %s43
      %s47 = sphi 0, %s46
      %s63 = sphi 0, %s47
      %s71 = sphi 0, %s73
      %s74 = sphi 0, %s71
      %s75 = sphi 0, %s74
      %s91 = sphi 0, %s75
      %s97 = sphi 0, %s99
      %s100 = sphi 0, %s97
      %s101 = sphi 0, %s100
      %s117 = sphi 0, %s101
      %s127 = sphi 0, %s129
      %s130 = sphi 0, %s127
      %s131 = sphi 0, %s130
      %s147 = sphi 0, %s131
    $region4: #{tpu_custom_call.1} parent=1 // loop_header_branch
      %15 = sbr.rel (%p13) target = $region8
    $region5: #{tpu_custom_call.1} parent=1 // loop_body
      %s17 = ssub.s32 %s12, 1
      %s18 = ssub.s32 %s12, 2
      %s28 = sadd.s32 1, %s21
      %p29 = scmp.ge.s32.totalorder %s28, 2
      %s30 = scalar_select %p29, 0, %s28
      %s31 = sadd.s32 1, %s20
      %s32 = scalar_select %p29, %s31, %s20
      %p33 = scmp.ge.s32.totalorder %s32, 1
      %s34 = scalar_select %p33, 0, %s32
      %s35 = sadd.s32 1, %s19
      %s36 = scalar_select %p33, %s35, %s19
      %p37 = scmp.ge.s32.totalorder %s36, 2
      %s38 = scalar_select %p37, 0, %s36
      %s39 = ssub.s32 %s19, %s38
      %s40 = ssub.s32 %s20, %s34
      %s41 = sor.u32 %s39, %s40
      %p42 = scmp.eq.s32.totalorder %s41, 0
      %s44 = sadd.s32 %s43, 1
      %s45 = scalar_select %p42, %s43, %s44
      %p48 = pneg %p42
      %p49 = scmp.eq.s32.totalorder %s12, 3
      %p50 = por %p48, %p49
      %p51 = scmp.ne.s32.totalorder %s43, %s46
      %p52 = scmp.eq.s32.totalorder %s12, 0
      %p53 = por %p51, %p52
      %p54 = scmp.ne.s32.totalorder %s43, %s46
      %p55 = scmp.eq.s32.totalorder %s17, 3
      %p56 = por %p54, %p55
      %p57 = scmp.ne.s32.totalorder %s46, %s47
      %p58 = scmp.eq.s32.totalorder %s17, 0
      %p59 = por %p57, %p58
      %p60 = scmp.ne.s32.totalorder %s46, %s47
      %p61 = scmp.eq.s32.totalorder %s18, 3
      %p62 = por %p60, %p61
      %p64 = scmp.ne.s32.totalorder %s47, %s63
      %p65 = scmp.eq.s32.totalorder %s18, 0
      %p66 = por %p64, %p65
      %s67 = ssub.s32 %s19, %s38
      %s68 = ssub.s32 %s21, %s30
      %s69 = sor.u32 %s67, %s68
      %p70 = scmp.eq.s32.totalorder %s69, 0
      %s72 = sadd.s32 %s71, 1
      %s73 = scalar_select %p70, %s71, %s72
      %p76 = pneg %p70
      %p77 = scmp.eq.s32.totalorder %s12, 3
      %p78 = por %p76, %p77
      %p79 = scmp.ne.s32.totalorder %s71, %s74
      %p80 = scmp.eq.s32.totalorder %s12, 0
      %p81 = por %p79, %p80
      %p82 = scmp.ne.s32.totalorder %s71, %s74
      %p83 = scmp.eq.s32.totalorder %s17, 3
      %p84 = por %p82, %p83
      %p85 = scmp.ne.s32.totalorder %s74, %s75
      %p86 = scmp.eq.s32.totalorder %s17, 0
      %p87 = por %p85, %p86
      %p88 = scmp.ne.s32.totalorder %s74, %s75
      %p89 = scmp.eq.s32.totalorder %s18, 3
      %p90 = por %p88, %p89
      %p92 = scmp.ne.s32.totalorder %s75, %s91
      %p93 = scmp.eq.s32.totalorder %s18, 0
      %p94 = por %p92, %p93
      %s95 = ssub.s32 %s21, %s30
      %p96 = scmp.eq.s32.totalorder %s95, 0
      %s98 = sadd.s32 %s97, 1
      %s99 = scalar_select %p96, %s97, %s98
      %p102 = pneg %p96
      %p103 = scmp.eq.s32.totalorder %s12, 3
      %p104 = por %p102, %p103
      %p105 = scmp.ne.s32.totalorder %s97, %s100
      %p106 = scmp.eq.s32.totalorder %s12, 0
      %p107 = por %p105, %p106
      %p108 = scmp.ne.s32.totalorder %s97, %s100
      %p109 = scmp.eq.s32.totalorder %s17, 3
      %p110 = por %p108, %p109
      %p111 = scmp.ne.s32.totalorder %s100, %s101
      %p112 = scmp.eq.s32.totalorder %s17, 0
      %p113 = por %p111, %p112
      %p114 = scmp.ne.s32.totalorder %s100, %s101
      %p115 = scmp.eq.s32.totalorder %s18, 3
      %p116 = por %p114, %p115
      %p118 = scmp.ne.s32.totalorder %s101, %s117
      %p119 = scmp.eq.s32.totalorder %s18, 0
      %p120 = por %p118, %p119
      %s121 = ssub.s32 %s19, %s38
      %s122 = ssub.s32 %s20, %s34
      %s123 = sor.u32 %s121, %s122
      %s124 = ssub.s32 %s21, %s30
      %s125 = sor.u32 %s123, %s124
      %p126 = scmp.eq.s32.totalorder %s125, 0
      %s128 = sadd.s32 %s127, 1
      %s129 = scalar_select %p126, %s127, %s128
      %p132 = pneg %p126
      %p133 = scmp.eq.s32.totalorder %s12, 3
      %p134 = por %p132, %p133
      %p135 = scmp.ne.s32.totalorder %s127, %s130
      %p136 = scmp.eq.s32.totalorder %s12, 0
      %p137 = por %p135, %p136
      %p138 = scmp.ne.s32.totalorder %s127, %s130
      %p139 = scmp.eq.s32.totalorder %s17, 3
      %p140 = por %p138, %p139
      %p141 = scmp.ne.s32.totalorder %s130, %s131
      %p142 = scmp.eq.s32.totalorder %s17, 0
      %p143 = por %p141, %p142
      %p144 = scmp.ne.s32.totalorder %s130, %s131
      %p145 = scmp.eq.s32.totalorder %s18, 3
      %p146 = por %p144, %p145
      %p148 = scmp.ne.s32.totalorder %s131, %s147
      %p149 = scmp.eq.s32.totalorder %s18, 0
      %p150 = por %p148, %p149
      %p151 = scmp.le.s32.totalorder 1, %s12
      %p152 = scmp.lt.s32.totalorder %s12, 5
      %p153 = pnand %p151, %p152
      %p154 = pneg %p153
      // Predicated region
      $region9: #{tpu_custom_call.1} parent=5 // pred_check
        _
      $region10: #{tpu_custom_call.1} parent=5 // pred_check_branch
        %156 = sbr.rel (%p153) target = $region12
      $region11: #{tpu_custom_call.1} parent=5 // pred_region
        %s157 = ssub.s32 %s12, 1
      $region12: #{tpu_custom_call.1} parent=5 // pred_fallthru
        _
      %p158 = scmp.lt.s32.totalorder %s12, 4
      // Predicated region
      $region13: #{tpu_custom_call.1} parent=5 // pred_check
        %p159 = pneg %p158
      $region14: #{tpu_custom_call.1} parent=5 // pred_check_branch
        %161 = sbr.rel (%p159) target = $region16
      $region15: #{tpu_custom_call.1} parent=5 // pred_region
        // Predicated region
        $region17: #{tpu_custom_call.1} parent=15 // pred_check
          %p162 = pneg %p53
        $region18: #{tpu_custom_call.1} parent=15 // pred_check_branch
          %164 = sbr.rel (%p162) target = $region20
        $region19: #{tpu_custom_call.1} parent=15 // pred_region
          %p165 = scmp.lt.s32.totalorder %s19, 1
          %s166 = scalar_select %p165, %s19, 1
          %p167 = scmp.lt.s32.totalorder %s20, 0
          %s168 = scalar_select %p167, %s20, 0
          %s169 = sadd.s32 %s168, %s166
          %s170 = smul.addr %s169, 8
          %s171 = scalar_lea.vmem %s0, %s170
        $region20: #{tpu_custom_call.1} parent=15 // pred_fallthru
          _
        // Predicated region
        $region21: #{tpu_custom_call.1} parent=15 // pred_check
          %p172 = pneg %p81
        $region22: #{tpu_custom_call.1} parent=15 // pred_check_branch
          %174 = sbr.rel (%p172) target = $region24
        $region23: #{tpu_custom_call.1} parent=15 // pred_region
          %p175 = scmp.lt.s32.totalorder %s19, 1
          %s176 = scalar_select %p175, %s19, 1
          %p177 = scmp.lt.s32.totalorder %s21, 1
          %s178 = scalar_select %p177, %s21, 1
          %s179 = smul.addr %s176, 2
          %s180 = sadd.s32 %s178, %s179
          %s181 = scalar_lea.vmem %s1, %s180
        $region24: #{tpu_custom_call.1} parent=15 // pred_fallthru
          _
        // Predicated region
        $region25: #{tpu_custom_call.1} parent=15 // pred_check
          %p182 = pneg %p107
        $region26: #{tpu_custom_call.1} parent=15 // pred_check_branch
          %184 = sbr.rel (%p182) target = $region28
        $region27: #{tpu_custom_call.1} parent=15 // pred_region
          %p185 = scmp.lt.s32.totalorder %s21, 1
          %s186 = scalar_select %p185, %s21, 1
          %s187 = scalar_lea.vmem %s2, %s186
        $region28: #{tpu_custom_call.1} parent=15 // pred_fallthru
          _
      $region16: #{tpu_custom_call.1} parent=5 // pred_fallthru
        _
      %p188 = scmp.le.s32.totalorder 1, %s12
      %p189 = scmp.lt.s32.totalorder %s12, 5
      %p190 = pnand %p188, %p189
      %p191 = pneg %p190
      // Predicated region
      $region29: #{tpu_custom_call.1} parent=5 // pred_check
        _
      $region30: #{tpu_custom_call.1} parent=5 // pred_check_branch
        %193 = sbr.rel (%p190) target = $region32
      $region31: #{tpu_custom_call.1} parent=5 // pred_region
        %s194 = ssub.s32 %s12, 1
        %p195 = scmp.lt.s32.totalorder %s22, 1
        %s196 = scalar_select %p195, %s22, 1
        %p197 = scmp.lt.s32.totalorder %s23, 0
        %s198 = scalar_select %p197, %s23, 0
        %s199 = sadd.s32 %s198, %s196
        %s200 = smul.addr %s199, 8
        %s201 = scalar_lea.vmem %s0, %s200
        %p202 = pneg %p59
        %p203 = pneg %p56
        %p204 = scmp.lt.s32.totalorder %s22, 1
        %s205 = scalar_select %p204, %s22, 1
        %p206 = scmp.lt.s32.totalorder %s24, 1
        %s207 = scalar_select %p206, %s24, 1
        %s208 = smul.addr %s205, 2
        %s209 = sadd.s32 %s207, %s208
        %s210 = scalar_lea.vmem %s1, %s209
        %p211 = pneg %p87
        %p212 = pneg %p84
        %p213 = scmp.lt.s32.totalorder %s24, 1
        %s214 = scalar_select %p213, %s24, 1
        %s215 = scalar_lea.vmem %s2, %s214
        %p216 = pneg %p113
        %p217 = pneg %p110
        %p218 = pneg %p143
        %p219 = pneg %p140
        %s220 = sand.u32 %s130, 1
        %s221 = scalar_lea.sflag [#allocation3], %s220
        %s222 = sand.u32 %s130, 1
        %s223 = smul.addr %s222, 8
        %s224 = scalar_lea.vmem [#allocation2], %s223
        %p225 = scmp.lt.s32.totalorder %s22, 1
        %s226 = scalar_select %p225, %s22, 1
        %p227 = scmp.lt.s32.totalorder %s23, 0
        %s228 = scalar_select %p227, %s23, 0
        %s229 = sadd.s32 %s228, %s226
        %s230 = smul.addr %s229, 8
        %s231 = scalar_lea.vmem %s0, %s230
        %p232 = scmp.lt.s32.totalorder %s22, 1
        %s233 = scalar_select %p232, %s22, 1
        %p234 = scmp.lt.s32.totalorder %s24, 1
        %s235 = scalar_select %p234, %s24, 1
        %s236 = smul.addr %s233, 2
        %s237 = sadd.s32 %s235, %s236
        %s238 = scalar_lea.vmem %s1, %s237
        %p239 = scmp.lt.s32.totalorder %s24, 1
        %s240 = scalar_select %p239, %s24, 1
        %s241 = scalar_lea.vmem %s2, %s240
        %v242 = vld [vmem:[%s231] sm:$0xff]
        %v243 = vld [vmem:[%s238] sm:$0x1]
        %244 = vset.pattern.permute.xlu0 0
        %245 = vperm.xlu0 %244, %v242
        %v246 = vpop.permute.xlu0 %245
        %v247 = vlaneseq
        %v248 = vshrl.u32 %v247, 7
        %v249 = vsub.s32 0, %v248
        %v250 = vrot.slane %v243, %v249
        %v251 = vsub.s32 %v246, %v250
        %vm252 = vcmp.lt.s32.totalorder %v251, 0
        %v253 = vsub.s32 0, %v251
        %v254 = vsel %vm252, %v253, %v251
        %v255 = vcvt.s32.f32 %v254
        %v256 = vld [vmem:[%s241] sm:$0x1]
        %v258 = vlaneseq
        %v259 = vshrl.u32 %v258, 7
        %v260 = vsub.s32 0, %v259
        %v261 = vrot.slane %v256, %v260
        %v263 = vmul.f32 %v255, %v261
        %v264 = vadd.f32 %v263, 1.0
        %v265 = vlog2.pop %v264
        %v266 = vmul.f32 %v265, 0.6931472
        %v267 = vmul.f32 -0.5, %v263
        %v268 = vadd.f32 %v267, 1.0
        %v269 = vmul.f32 %v268, %v263
        %v270 = vand.u32 2147483647, %v263
        %vm271 = vcmp.lt.f32.partialorder %v270, 0.0004427343
        %v272 = vsel %vm271, %v269, %v266
        %273 = vst [vmem:[%s224] sm:$0xff] %v272
        %s274 = sand.u32 %s130, 1
        %s275 = scalar_lea.sflag [#allocation3], %s274
        %s276 = sand.u32 %s130, 1
        %s277 = smul.addr %s276, 8
        %s278 = scalar_lea.vmem [#allocation2], %s277
        // Predicated region
        $region33: #{tpu_custom_call.1} parent=31 // pred_check
          %p279 = pneg %p140
        $region34: #{tpu_custom_call.1} parent=31 // pred_check_branch
          %281 = sbr.rel (%p279) target = $region36
        $region35: #{tpu_custom_call.1} parent=31 // pred_region
          %s283 = ssub.s32 128, 128
          %284 = vsyncadd %s275, %s283
          %s285 = smul.addr %s23, 2
          %s286 = sadd.s32 %s24, %s285
          %s287 = smul.addr %s22, 2
          %s288 = sadd.s32 %s286, %s287
          %s289 = smul.addr %s288, 128
          %s290 = scalar_lea.hbm %s3, %s289
          %s292 = sshll.u32 %s278, 4
          %s293 = int_to_ptr.vmem [resolvable:$true] %s292
          %295 = dma.vmem_to_hbm [thread:$0]  %s293, 128, %s290, %s275
        $region36: #{tpu_custom_call.1} parent=31 // pred_fallthru
          _
      $region32: #{tpu_custom_call.1} parent=5 // pred_fallthru
        _
      %p296 = scmp.le.s32.totalorder 2, %s12
      // Predicated region
      $region37: #{tpu_custom_call.1} parent=5 // pred_check
        %p297 = pneg %p296
      $region38: #{tpu_custom_call.1} parent=5 // pred_check_branch
        %299 = sbr.rel (%p297) target = $region40
      $region39: #{tpu_custom_call.1} parent=5 // pred_region
        %s300 = ssub.s32 %s12, 2
        // Predicated region
        $region41: #{tpu_custom_call.1} parent=39 // pred_check
          %p301 = pneg %p146
        $region42: #{tpu_custom_call.1} parent=39 // pred_check_branch
          %303 = sbr.rel (%p301) target = $region44
        $region43: #{tpu_custom_call.1} parent=39 // pred_region
          %s304 = sand.u32 %s131, 1
          %s305 = scalar_lea.sflag [#allocation3], %s304
          %s306 = sand.u32 %s131, 1
          %s307 = smul.addr %s306, 8
          %s308 = scalar_lea.vmem [#allocation2], %s307
          %309 = dma.done %s305, 128
        $region44: #{tpu_custom_call.1} parent=39 // pred_fallthru
          _
      $region40: #{tpu_custom_call.1} parent=5 // pred_fallthru
        _
    $region6: #{tpu_custom_call.1} parent=1 // loop_footer
      %s16 = sadd.s32 1, %s12
    $region7: #{tpu_custom_call.1} parent=1 // loop_footer_branch
      %11 = sbr.rel target = $region3
    $region8: #{tpu_custom_call.1} parent=1 // loop_exit
      _
    %310 = vsyncpa [#allocation3], 1
    %s311 = scalar_lea.sflag [#allocation3], 1
    %312 = vsyncpa %s311, 1

</llo_original>
